<compile_context>
chip_gen: v6e
topology: v6e:2x2x1
jax: 0.10.0
libtpu: 0.0.40
codegen_flags: <defaults>
</compile_context>

<pallas_src>
from functools import partial

import jax
import jax.numpy as jnp
from jax.experimental import pallas as pl
from jax.experimental.pallas import tpu as pltpu


def _relu_kernel(x_ref, o_ref):
    # Pure VPU elementwise max against 0 on the whole VMEM tile.
    o_ref[...] = jnp.maximum(x_ref[...], jnp.zeros((), dtype=o_ref.dtype))


def _round_up(a, b):
    return ((a + b - 1) // b) * b


def _choose_tiling(total, itemsize, target_block_bytes):
    """Pick (lane_width, tm, ntiles, rows_padded) for the flattened slab.

    Prefers a lane width that divides `total` (no padding) and a row tile that
    divides the row count exactly; otherwise minimizes padded rows.
    """
    align = max(8, 32 // itemsize)  # sublane pack: f32 -> 8, bf16 -> 16, int8 -> 32
    best = None                     # (pad_elems, w, tm, ntiles, rows_padded)

    def _tile(w, rows):
        max_rows = max(align, (target_block_bytes // (w * itemsize)) // align * align)
        ntiles = pl.cdiv(rows, max_rows)
        tm = _round_up(pl.cdiv(rows, ntiles), align)
        ntiles = pl.cdiv(rows, tm)
        return tm, ntiles, ntiles * tm

    for w in (512, 256, 128):
        if total % w:
            continue
        rows = total // w
        if rows * w * itemsize <= target_block_bytes:
            # Single full-extent block (block shape == array shape): no
            # alignment requirement on the row dim, zero padding.
            return w, rows, 1, rows
        tm, ntiles, rows_padded = _tile(w, rows)
        pad = (rows_padded - rows) * w
        if pad == 0:
            return w, tm, ntiles, rows_padded
        if best is None or pad < best[0]:
            best = (pad, w, tm, ntiles, rows_padded)

    if best is not None:
        _, w, tm, ntiles, rows_padded = best
        return w, tm, ntiles, rows_padded

    # Not divisible by 128 at all: pad up to a 512-wide lane-dense slab.
    w = 512
    rows = pl.cdiv(total, w)
    if rows * w * itemsize <= target_block_bytes:
        return w, rows, 1, rows
    tm, ntiles, rows_padded = _tile(w, rows)
    return w, tm, ntiles, rows_padded


def relu_forward(x, *, target_block_bytes=4 * 1024 * 1024, in_place=False):
    """y = max(x, 0) via a tiled, pipelined Pallas TPU kernel.

    Works for any shape/dtype.  Aligned sizes (divisible by 128) take a
    zero-copy reshape path; ragged sizes fall back to minimal padding.
    `in_place=True` aliases the input buffer to the output (pair it with a
    donated argument under jit).
    """
    orig_shape = x.shape
    dtype = x.dtype
    total = x.size
    if total == 0:
        return x
    itemsize = jnp.dtype(dtype).itemsize

    lane_width, tm, ntiles, rows_padded = _choose_tiling(
        total, itemsize, target_block_bytes)
    padded_total = rows_padded * lane_width

    flat = jnp.ravel(x)
    needs_pad = padded_total != total
    if needs_pad:
        flat = jnp.pad(flat, (0, padded_total - total))
    x2d = flat.reshape(rows_padded, lane_width)

    out2d = pl.pallas_call(
        _relu_kernel,
        out_shape=jax.ShapeDtypeStruct((rows_padded, lane_width), dtype),
        grid_spec=pltpu.PrefetchScalarGridSpec(
            num_scalar_prefetch=0,
            grid=(ntiles,),
            in_specs=[pl.BlockSpec((tm, lane_width), lambda i: (i, 0))],
            out_specs=pl.BlockSpec((tm, lane_width), lambda i: (i, 0)),
        ),
        compiler_params=pltpu.CompilerParams(
            dimension_semantics=("parallel",),
            vmem_limit_bytes=32 * 1024 * 1024,
        ),
        input_output_aliases=({0: 0} if in_place else {}),
    )(x2d)

    if needs_pad:
        return out2d.reshape(-1)[:total].reshape(orig_shape)
    return out2d.reshape(orig_shape)


# Donating, in-place-aliased variant (for callers that no longer need x).
relu_forward_donated = jax.jit(
    partial(relu_forward, in_place=True), donate_argnums=0)


# TODO(synk): backward (mask by saved activation sign) and the Module param()/
# lr bookkeeping are training-side state, not forward compute; not kernelized.


if __name__ == "__main__":
    key = jax.random.PRNGKey(0)

    # Small deterministic input consistent with an elementwise activation.
    x = jax.random.normal(key, (2, 4, 16, 16), dtype=jnp.float32)
    y = jax.block_until_ready(relu_forward(x))
    y_ref = jnp.maximum(x, 0.0)            # torch x.clamp(min=0) == max(x, 0)
    assert y.shape == x.shape and y.dtype == x.dtype
    assert jnp.array_equal(y, y_ref)

    # Aligned single-block path (2.5 MiB slab).
    x_big = jax.random.normal(jax.random.PRNGKey(1), (1024, 640), jnp.float32)
    y_big = jax.block_until_ready(relu_forward(x_big))
    assert jnp.array_equal(y_big, jnp.maximum(x_big, 0.0))

    # Aligned multi-tile path (16 MiB -> 4 blocks of (2048, 512), no padding).
    x_mt = jax.random.normal(jax.random.PRNGKey(2), (4096, 1024), jnp.float32)
    y_mt = jax.block_until_ready(relu_forward(x_mt))
    assert jnp.array_equal(y_mt, jnp.maximum(x_mt, 0.0))

    # Ragged (not divisible by 128) -> padded fallback path.
    x_rag = jax.random.normal(jax.random.PRNGKey(3), (7, 13, 5), jnp.float32)
    y_rag = jax.block_until_ready(relu_forward(x_rag))
    assert jnp.array_equal(y_rag, jnp.maximum(x_rag, 0.0))

    # bf16 (dtype-scaled row alignment).
    x_bf = jax.random.normal(jax.random.PRNGKey(4), (64, 384), jnp.bfloat16)
    y_bf = jax.block_until_ready(relu_forward(x_bf))
    assert jnp.array_equal(y_bf, jnp.maximum(x_bf, jnp.bfloat16(0)))

    # Donated, input/output-aliased path.
    x_d = jax.random.normal(jax.random.PRNGKey(5), (512, 512), jnp.float32)
    y_d_ref = jnp.maximum(x_d, 0.0)
    y_d = jax.block_until_ready(relu_forward_donated(x_d))
    assert jnp.array_equal(y_d, y_d_ref)

    print("KERNEL_OK")
</pallas_src>

<mosaic_0001>
module attributes {stable_mosaic.version = 11 : i64} {
  func.func @_relu_kernel(%arg0: i32, %arg1: memref<4x512xf32, #tpu.memory_space<vmem>>, %arg2: memref<4x512xf32, #tpu.memory_space<vmem>>) attributes {dimension_semantics = [#tpu.dimension_semantics<parallel>], iteration_bounds = array<i64: 1>, scalar_prefetch = 0 : i64, scratch_operands = 0 : i64, tpu.core_type = #tpu.core_type<tc>, window_params = [{transform_indices = @transform_0, window_bounds = array<i64: 4, 512>}, {transform_indices = @transform_1, window_bounds = array<i64: 4, 512>}]} {
    %c0 = arith.constant 0 : index
    %c0_0 = arith.constant 0 : index
    %0 = vector.load %arg1[%c0, %c0_0] : memref<4x512xf32, #tpu.memory_space<vmem>>, vector<4x512xf32>
    %cst = arith.constant 0.000000e+00 : f32
    %1 = vector.broadcast %cst : f32 to vector<4x512xf32>
    %2 = arith.maximumf %0, %1 : vector<4x512xf32>
    %c0_1 = arith.constant 0 : index
    %c0_2 = arith.constant 0 : index
    %3 = vector.load %arg2[%c0_1, %c0_2] : memref<4x512xf32, #tpu.memory_space<vmem>>, vector<4x512xf32>
    tpu.vector_store %arg2[%c0_1, %c0_2], %2 {strides = array<i32>} : memref<4x512xf32, #tpu.memory_space<vmem>>, vector<4x512xf32>,
    return
  }
  func.func @transform_0(%arg0: i32) -> (i32, i32) {
    %c0_i32 = arith.constant 0 : i32
    %c0_i32_0 = arith.constant 0 : i32
    return %arg0, %c0_i32 : i32, i32
  }
  func.func @transform_1(%arg0: i32) -> (i32, i32) {
    %c0_i32 = arith.constant 0 : i32
    %c0_i32_0 = arith.constant 0 : i32
    return %arg0, %c0_i32 : i32, i32
  }
}

</mosaic_0001>

<llo_original>
// kernel: tpu_custom_call.1
$region0: #{tpu_custom_call.1}
  #allocation0 [shape = 'u32[]', space=smem, size = 0x4, offset = 0x4, fixed_abs, tag = 'smem constant byte address 0x4 - core index']
  #allocation1 [shape = 'u32[144,128]{1,0:T(1,128)}', space=vmem, size = 0x12000, scoped, tag = 'internal scratch']
  %s0 = inlined_call_operand.hbm [shape: f32[4,512], index: 0, kind: input, shape index: {}]
  %s1 = inlined_call_operand.hbm [shape: f32[4,512], index: 1, kind: output, shape index: {}]
  %s2 = sld [smem:[#allocation0]]
  $region18: #{tpu_custom_call.1} parent=0
    _
  %s4 = ssub.s32 1, %s2
  %s5 = scalar_select 0, %s4, %s2
  $region1: #{tpu_custom_call.1} parent=0
    #allocation2 [shape = 'u8[8192]{0}', space=vmem, size = 0x2000, scoped, tag = 'input window, operand 0, single buffered']
    #allocation3 [shape = 's32[1]{0}', space=sflag, size = 0x4, scoped, tag = 'scoped memory for tpu_custom_call.1']
    #allocation4 [shape = 's32[1]{0}', space=sflag, size = 0x4, scoped, tag = 'scoped memory for tpu_custom_call.1']
    #allocation5 [shape = 'u8[8192]{0}', space=vmem, size = 0x2000, scoped, tag = 'output window, operand 0, single buffered']
    %6 = vsyncpa [#allocation3], 0
    %7 = vsyncpa [#allocation4], 0
    // Predicated region
    $region2: #{tpu_custom_call.1} parent=1 // pred_check
      _
    $region3: #{tpu_custom_call.1} parent=1 // pred_check_branch
      %9 = sbr.rel (0) target = $region5
    $region4: #{tpu_custom_call.1} parent=1 // pred_region
      %s11 = ssub.s32 256, 256
      %12 = vsyncadd [#allocation3], %s11
      %s14 = sshll.u32 [#allocation2], 4
      %s15 = int_to_ptr.vmem [resolvable:$true] %s14
      %17 = dma.hbm_to_vmem [thread:$0]  %s0, 256, %s15, [#allocation3]
    $region5: #{tpu_custom_call.1} parent=1 // pred_fallthru
      _
    // Predicated region
    $region6: #{tpu_custom_call.1} parent=1 // pred_check
      _
    $region7: #{tpu_custom_call.1} parent=1 // pred_check_branch
      %19 = sbr.rel (0) target = $region9
    $region8: #{tpu_custom_call.1} parent=1 // pred_region
      %20 = dma.done [#allocation3], 256
    $region9: #{tpu_custom_call.1} parent=1 // pred_fallthru
      _
    %v21 = vld [vmem:[#allocation2] sm:$0xff]
    %v22 = vld [vmem:[#allocation2 + $0x8] sm:$0xff]
    %v23 = vmax.f32 %v21, 0.0
    %v24 = vmax.f32 %v22, 0.0
    %25 = vst [vmem:[#allocation5] sm:$0xff] %v23
    %26 = vst [vmem:[#allocation5 + $0x8] sm:$0xff] %v24
    // Predicated region
    $region10: #{tpu_custom_call.1} parent=1 // pred_check
      _
    $region11: #{tpu_custom_call.1} parent=1 // pred_check_branch
      %28 = sbr.rel (0) target = $region13
    $region12: #{tpu_custom_call.1} parent=1 // pred_region
      %s30 = ssub.s32 256, 256
      %31 = vsyncadd [#allocation4], %s30
      %s33 = sshll.u32 [#allocation5], 4
      %s34 = int_to_ptr.vmem [resolvable:$true] %s33
      %36 = dma.vmem_to_hbm [thread:$0]  %s34, 256, %s1, [#allocation4]
    $region13: #{tpu_custom_call.1} parent=1 // pred_fallthru
      _
    // Predicated region
    $region14: #{tpu_custom_call.1} parent=1 // pred_check
      _
    $region15: #{tpu_custom_call.1} parent=1 // pred_check_branch
      %38 = sbr.rel (0) target = $region17
    $region16: #{tpu_custom_call.1} parent=1 // pred_region
      %39 = dma.done [#allocation4], 256
    $region17: #{tpu_custom_call.1} parent=1 // pred_fallthru
      _
    %40 = vsyncpa [#allocation3], 1
    %41 = vsyncpa [#allocation4], 1

</llo_original>
